<compile_context>
chip_gen: v7x
topology: tpu7x:2x2x1
jax: 0.10.0
libtpu: 0.0.40
codegen_flags: <defaults>
</compile_context>

<pallas_src>
import jax
import jax.numpy as jnp
from jax.experimental import pallas as pl
from jax.experimental.pallas import tpu as pltpu


_LANE_MAX = 1024                  # max lane width, multiple of 128
_BLOCK_BYTES = 2 * 1024 * 1024    # ~2 MiB per block (x2 buffers x in/out ~ 8 MiB VMEM)
_VMEM_LIMIT = 32 * 1024 * 1024    # scoped VMEM headroom; OK on v5e/v6e/v7x


def _negation_kernel(flag_ref, x_ref, o_ref):
    """flag_ref: SMEM int32[1]; x_ref/o_ref: (TR, C) VMEM blocks."""
    sign = (1 - 2 * flag_ref[0]).astype(x_ref.dtype)    # +1 (keep) / -1 (negate)
    o_ref[...] = x_ref[...] * sign


def _sublane_multiple(dtype):
    """Minimum sublane multiple for packed tiling: 8 (f32), 16 (bf16), 32 (int8)."""
    itemsize = jnp.dtype(dtype).itemsize
    if itemsize >= 4:
        return 8
    if itemsize == 2:
        return 16
    return 32


def _plan_layout(total, dtype):
    """Pick a copy-free lane-dense [R, C] layout and row tile TR.

    R * C == total (no padding), C is a multiple of 128, and TR respects the
    dtype's packed sublane multiple (or TR == R, i.e. full-extent block).
    Returns None when total is not a multiple of 128 (single-block fallback).
    """
    if total % 128 != 0:
        return None
    # Largest multiple of 128 that divides total, capped at _LANE_MAX.
    c = 128
    for cand in range(min(_LANE_MAX, total), 127, -128):
        if total % cand == 0:
            c = cand
            break
    r = total // c
    sub = _sublane_multiple(dtype)
    if r <= sub:
        return r, c, r                               # single block along rows
    itemsize = jnp.dtype(dtype).itemsize
    cap = max(sub, (_BLOCK_BYTES // (c * itemsize)) // sub * sub)
    cap = min(cap, (r // sub) * sub)
    # Prefer a row tile that divides R (no ragged/masked last block).
    tr = 0
    for cand in range(cap, sub - 1, -sub):
        if r % cand == 0:
            tr = cand
            break
    if tr == 0:
        tr = cap                                     # ragged last block; Pallas masks it
    return r, c, tr


@jax.jit
def _negate_pair(x, flag):
    """Return x negated iff flag[0] == 1, via a lane-dense streaming Pallas kernel."""
    total = x.size
    plan = _plan_layout(total, x.dtype)
    if plan is None:
        # TODO(synk): element counts not divisible by 128 fall back to a single
        # full-array block; fine for small tensors, will not tile very large ones.
        r, c, tr = 1, total, 1
        x2d = x.reshape(1, total)
    else:
        r, c, tr = plan
        x2d = x.reshape(r, c)

    out = pl.pallas_call(
        _negation_kernel,
        out_shape=jax.ShapeDtypeStruct((r, c), x.dtype),
        grid_spec=pltpu.PrefetchScalarGridSpec(
            num_scalar_prefetch=1,                    # flag -> SMEM
            grid=(pl.cdiv(r, tr),),
            in_specs=[pl.BlockSpec((tr, c), lambda i, flag_ref: (i, 0))],
            out_specs=pl.BlockSpec((tr, c), lambda i, flag_ref: (i, 0)),
        ),
        compiler_params=pltpu.CompilerParams(
            # TODO(synk): on v7x, CORE_PARALLEL / pl.core_map over the row axis
            # would shard the stream across both TensorCores for ~2x bandwidth.
            dimension_semantics=("parallel",),
            vmem_limit_bytes=_VMEM_LIMIT,
        ),
    )(flag, x2d)
    return out.reshape(x.shape)


class NegationAugmenter:
    """JAX/Pallas port of the PyTorch NegationAugmenter."""

    def __init__(self, locations, modalities, prob):
        self.locations = locations
        self.modalities = modalities
        self.p = prob

    def forward(self, org_loc_inputs, key, labels=None):
        pairs = [(loc, mod) for loc in self.locations for mod in self.modalities]
        n_pairs = len(pairs)

        # Deterministic replacement for Python random(): one uniform per pair.
        u = jax.random.uniform(key, (n_pairs,), dtype=jnp.float32)
        flags = (u < self.p).astype(jnp.int32)        # 1 -> negate

        b = org_loc_inputs[pairs[0][0]][pairs[0][1]].shape[0]

        aug_loc_inputs = {loc: {} for loc in self.locations}
        for idx, (loc, mod) in enumerate(pairs):
            x = org_loc_inputs[loc][mod]
            aug_loc_inputs[loc][mod] = _negate_pair(x, flags[idx:idx + 1])

        # Label tiling is cheap glue; keep it in plain JAX.
        aug_mod_labels = jnp.tile(flags.astype(jnp.float32)[None, :], (b, 1))
        return aug_loc_inputs, aug_mod_labels, labels


if __name__ == "__main__":
    # Synthetic config (deterministic, small shapes consistent with [b, c, i, s]).
    locations = ["loc_a", "loc_b"]
    modalities = ["audio", "acc"]
    prob = 0.5
    b, c, i, s = 2, 4, 16, 16

    key = jax.random.PRNGKey(0)
    k_in, k_aug, k_big = jax.random.split(key, 3)

    org_loc_inputs = {}
    ks = jax.random.split(k_in, len(locations) * len(modalities))
    idx = 0
    for loc in locations:
        org_loc_inputs[loc] = {}
        for mod in modalities:
            org_loc_inputs[loc][mod] = jax.random.normal(
                ks[idx], (b, c, i, s), dtype=jnp.float32)
            idx += 1

    augmenter = NegationAugmenter(locations, modalities, prob)
    aug_inputs, aug_mod_labels, labels = augmenter.forward(
        org_loc_inputs, k_aug, labels=None)

    # Block on all outputs.
    for loc in locations:
        for mod in modalities:
            jax.block_until_ready(aug_inputs[loc][mod])
    jax.block_until_ready(aug_mod_labels)

    # --- correctness vs. pure-JAX reference (same PRNG draws) ----------------
    u = jax.random.uniform(k_aug, (len(locations) * len(modalities),),
                           dtype=jnp.float32)
    flags = (u < prob).astype(jnp.int32)
    idx = 0
    ok = True
    for loc in locations:
        for mod in modalities:
            x = org_loc_inputs[loc][mod]
            ref = -x if int(flags[idx]) == 1 else x
            ok &= bool(jnp.array_equal(aug_inputs[loc][mod], ref))
            idx += 1
    ref_labels = jnp.tile(flags.astype(jnp.float32)[None, :], (b, 1))
    ok &= bool(jnp.array_equal(aug_mod_labels, ref_labels))
    ok &= aug_mod_labels.shape == (b, len(locations) * len(modalities))

    # --- also exercise the multi-block tiled path (grid > 1) -----------------
    x_big = jax.random.normal(k_big, (4, 4, 256, 256), dtype=jnp.float32)  # 4 MiB
    neg_big = _negate_pair(x_big, jnp.array([1], dtype=jnp.int32))
    jax.block_until_ready(neg_big)
    ok &= bool(jnp.array_equal(neg_big, -x_big))

    if ok:
        print("KERNEL_OK")
</pallas_src>

<mosaic_0001>
module attributes {stable_mosaic.version = 11 : i64} {
  func.func @_negation_kernel(%arg0: i32, %arg1: memref<1xi32, #tpu.memory_space<smem>>, %arg2: memref<2x1024xf32, #tpu.memory_space<vmem>>, %arg3: memref<2x1024xf32, #tpu.memory_space<vmem>>) attributes {dimension_semantics = [#tpu.dimension_semantics<parallel>], iteration_bounds = array<i64: 1>, scalar_prefetch = 1 : i64, scratch_operands = 0 : i64, tpu.core_type = #tpu.core_type<tc>, window_params = [{transform_indices = @transform_0, window_bounds = array<i64: 2, 1024>}, {transform_indices = @transform_1, window_bounds = array<i64: 2, 1024>}]} {
    %c0 = arith.constant 0 : index
    %0 = memref.load %arg1[%c0] : memref<1xi32, #tpu.memory_space<smem>>
    %c2_i32 = arith.constant 2 : i32
    %1 = arith.muli %c2_i32, %0 : i32
    %c1_i32 = arith.constant 1 : i32
    %2 = arith.subi %c1_i32, %1 : i32
    %3 = arith.sitofp %2 : i32 to f32
    %c0_0 = arith.constant 0 : index
    %c0_1 = arith.constant 0 : index
    %4 = vector.load %arg2[%c0_0, %c0_1] : memref<2x1024xf32, #tpu.memory_space<vmem>>, vector<2x1024xf32>
    %5 = vector.broadcast %3 : f32 to vector<2x1024xf32>
    %6 = arith.mulf %4, %5 : vector<2x1024xf32>
    %c0_2 = arith.constant 0 : index
    %c0_3 = arith.constant 0 : index
    %7 = vector.load %arg3[%c0_2, %c0_3] : memref<2x1024xf32, #tpu.memory_space<vmem>>, vector<2x1024xf32>
    tpu.vector_store %arg3[%c0_2, %c0_3], %6 {strides = array<i32>} : memref<2x1024xf32, #tpu.memory_space<vmem>>, vector<2x1024xf32>,
    return
  }
  func.func @transform_0(%arg0: i32, %arg1: memref<1xi32, #tpu.memory_space<smem>>) -> (i32, i32) {
    %c0_i32 = arith.constant 0 : i32
    %c0_i32_0 = arith.constant 0 : i32
    return %arg0, %c0_i32 : i32, i32
  }
  func.func @transform_1(%arg0: i32, %arg1: memref<1xi32, #tpu.memory_space<smem>>) -> (i32, i32) {
    %c0_i32 = arith.constant 0 : i32
    %c0_i32_0 = arith.constant 0 : i32
    return %arg0, %c0_i32 : i32, i32
  }
}

</mosaic_0001>

<llo_original>
// kernel: _negate_pair.1
$region0: #{_negate_pair.1}
  #allocation0 [shape = 'u32[]', space=smem, size = 0x4, offset = 0x4, fixed_abs, tag = 'smem constant byte address 0x4 - core index']
  #allocation1 [shape = 'u32[144,128]{1,0:T(1,128)}', space=vmem, size = 0x12000, scoped, tag = 'internal scratch']
  #allocation2 [shape = 's32[1]{0}', space=sflag, size = 0x4, scoped, tag = 'scoped memory for _negate_pair.1']
  #allocation3 [shape = 's32[1]{0:T(128)S(6)}', space=smem, size = 0x200, scoped, tag = 'prefetched SMEM operand 0']
  %s0 = inlined_call_operand.<no memory space> [shape: s32[1], index: 0, kind: input, shape index: {}]
  %s1 = inlined_call_operand.vmem [shape: f32[2,1024], index: 1, kind: input, shape index: {}]
  %s2 = inlined_call_operand.vmem [shape: f32[2,1024], index: 2, kind: output, shape index: {}]
  %s3 = sld [smem:[#allocation0]]
  $region14: #{_negate_pair.1} parent=0
    _
  %s5 = ssub.s32 1, %s3
  %s6 = scalar_select 0, %s5, %s3
  %7 = sst [smem:[#allocation3]] %s0
  // Predicated region
  $region2: #{_negate_pair.1} parent=0 // pred_check
    _
  $region3: #{_negate_pair.1} parent=0 // pred_check_branch
    %9 = sbr.rel (0) target = $region5
  $region4: #{_negate_pair.1} parent=0 // pred_region
    _
  $region5: #{_negate_pair.1} parent=0 // pred_fallthru
    _
  %s10 = sld [smem:[#allocation3]]
  %s11 = smul.u32 %s10, 2
  %s12 = ssub.s32 1, %s11
  %s13 = scvt.s32.f32 %s12
  %v14 = vld [vmem:[%s1] sm:$0xff]
  %v15 = vld [vmem:[%s1 + $0x8] sm:$0xff]
  %v16 = vstv %s13
  %v17 = vmul.f32 %v14, %v16
  %v18 = vmul.f32 %v15, %v16
  %19 = vst [vmem:[%s2] sm:$0xff] %v17
  %20 = vst [vmem:[%s2 + $0x8] sm:$0xff] %v18
  // Predicated region
  $region6: #{_negate_pair.1} parent=0 // pred_check
    _
  $region7: #{_negate_pair.1} parent=0 // pred_check_branch
    %22 = sbr.rel (0) target = $region9
  $region8: #{_negate_pair.1} parent=0 // pred_region
    _
  $region9: #{_negate_pair.1} parent=0 // pred_fallthru
    _
  // Predicated region
  $region10: #{_negate_pair.1} parent=0 // pred_check
    _
  $region11: #{_negate_pair.1} parent=0 // pred_check_branch
    %24 = sbr.rel (0) target = $region13
  $region12: #{_negate_pair.1} parent=0 // pred_region
    _
  $region13: #{_negate_pair.1} parent=0 // pred_fallthru
    _

</llo_original>
